<compile_context>
chip_gen: v7x
topology: tpu7x:2x2x1
jax: 0.10.0
libtpu: 0.0.40
codegen_flags: <defaults>
</compile_context>

<pallas_src>
import functools

import jax
import jax.numpy as jnp
from jax import lax
from jax.experimental import pallas as pl
from jax.experimental.pallas import tpu as pltpu


def _ceil_div(a, b):
    return -(-a // b)


def _round_up(a, b):
    return _ceil_div(a, b) * b


_VMEM_LIMIT = 48 * 1024 * 1024  # fits v5e/v6e (128 MiB) and v7x (64 MiB)


# ----------------------------------------------------------------------------
# Kernel 1: objectness BCE over all anchors.
#   x_ref : (2, TN) f32 -- row 0 obj logit, row 1 fg target (0/1).
#   out   : (1, TN) f32 per-lane partial sums (resident accumulator).
# ----------------------------------------------------------------------------
def _obj_kernel(x_ref, out_ref, *, n_real):
    t = pl.program_id(0)
    tn = x_ref.shape[1]

    @pl.when(t == 0)
    def _init():
        out_ref[...] = jnp.zeros_like(out_ref)

    col = t * tn + lax.broadcasted_iota(jnp.int32, (1, tn), 1)
    validf = (col < n_real).astype(jnp.float32)          # mask host zero-pad

    x = x_ref[...]
    logit = x[0:1, :]
    tgt = x[1:2, :]
    # numerically stable BCE-with-logits (== F.binary_cross_entropy_with_logits)
    bce = jnp.maximum(logit, 0.0) - logit * tgt + jnp.log1p(jnp.exp(-jnp.abs(logit)))
    out_ref[...] += bce * validf


# ----------------------------------------------------------------------------
# Kernel 2: iou loss + classification BCE over the FOREGROUND-COMPACTED stream.
#   cnt_ref  : (1,) int32 in SMEM -- number of real foreground anchors.
#   feat_ref : (10, TN) f32 -- rows 0-3 pred box cxcywh, 4-7 matched gt box,
#              8 matched class index (as float), 9 is_real flag (0/1).
#   cls_ref  : (C, TN) f32 class logits of the compacted anchors.
#   outputs  : iou_out (1, TN), cls_out (1, TN) resident partial sums.
# Tiles whose first column is past the fg count are skipped entirely.
# ----------------------------------------------------------------------------
def _fg_kernel(cnt_ref, feat_ref, cls_ref, iou_out, cls_out):
    t = pl.program_id(0)
    tn = feat_ref.shape[1]

    @pl.when(t == 0)
    def _init():
        iou_out[...] = jnp.zeros_like(iou_out)
        cls_out[...] = jnp.zeros_like(cls_out)

    @pl.when(t * tn < cnt_ref[0])
    def _compute():
        feat = feat_ref[...]                              # (10, TN)
        pcx, pcy = feat[0:1, :], feat[1:2, :]
        pw, ph = feat[2:3, :], feat[3:4, :]
        tcx, tcy = feat[4:5, :], feat[5:6, :]
        tw, th = feat[6:7, :], feat[7:8, :]
        cls_idx = feat[8:9, :].astype(jnp.int32)
        is_real = feat[9:10, :]

        # matched pairwise IoU (cxcywh boxes); padded columns are all-zero
        iw = jnp.maximum(jnp.minimum(pcx + 0.5 * pw, tcx + 0.5 * tw)
                         - jnp.maximum(pcx - 0.5 * pw, tcx - 0.5 * tw), 0.0)
        ih = jnp.maximum(jnp.minimum(pcy + 0.5 * ph, tcy + 0.5 * th)
                         - jnp.maximum(pcy - 0.5 * ph, tcy - 0.5 * th), 0.0)
        inter = iw * ih
        union = pw * ph + tw * th - inter
        iou = inter / (union + 1e-16)                     # (1, TN)

        # IoU loss (type "iou": 1 - iou^2) over real foreground anchors
        iou_out[...] += (1.0 - iou * iou) * is_real

        # classification BCE, target = onehot(cls_idx) * iou:
        #   sum_c bce(x_c, onehot_c*iou) = sum_c softplus(x_c) - iou * x_[cls_idx]
        x = cls_ref[...]                                  # (C, TN) f32
        c = x.shape[0]
        softplus = jnp.maximum(x, 0.0) + jnp.log1p(jnp.exp(-jnp.abs(x)))
        sp_sum = jnp.sum(softplus, axis=0, keepdims=True)              # (1, TN)
        ciota = lax.broadcasted_iota(jnp.int32, (c, 1), 0)             # (C, 1)
        x_sel = jnp.sum(jnp.where(ciota == cls_idx, x, 0.0),
                        axis=0, keepdims=True)                         # (1, TN)
        cls_out[...] += (sp_sum - iou * x_sel) * is_real


# ----------------------------------------------------------------------------
# Wrapper: pack streams, launch kernels, reduce, weight.
# ----------------------------------------------------------------------------
def _yolox_total_loss(pbox, obj_logit, cls_logit, fg, tbox, tcls_idx,
                      *, tile_n=8192, k_cap=None):
    """pbox [B,A,4], obj_logit [B,A,1], cls_logit [B,A,C], fg [B,A] (0/1),
       tbox [B,A,4], tcls_idx [B,A]. Returns scalar total loss."""
    b, a, c = cls_logit.shape
    n = b * a
    f32 = jnp.float32

    # ---- objectness stream over all anchors --------------------------------
    tn_obj = min(_round_up(tile_n, 128), _round_up(n, 128))
    npad = _round_up(n, tn_obj)
    obj_rows = jnp.stack([obj_logit.reshape(n).astype(f32),
                          fg.reshape(n).astype(f32)], axis=0)          # (2, N)
    obj_stream = jnp.pad(obj_rows, ((0, 0), (0, npad - n)))            # (2, Npad)

    obj_part = pl.pallas_call(
        functools.partial(_obj_kernel, n_real=n),
        out_shape=jax.ShapeDtypeStruct((1, tn_obj), f32),
        grid_spec=pltpu.PrefetchScalarGridSpec(
            num_scalar_prefetch=0,
            grid=(npad // tn_obj,),
            in_specs=[pl.BlockSpec((2, tn_obj), lambda t: (0, t))],
            out_specs=pl.BlockSpec((1, tn_obj), lambda t: (0, 0)),
        ),
        compiler_params=pltpu.CompilerParams(
            dimension_semantics=("arbitrary",),
            vmem_limit_bytes=_VMEM_LIMIT),
    )(obj_stream)

    # ---- foreground-compacted stream (iou + cls) ----------------------------
    # Static cap on compacted anchors; default n guarantees exactness.
    # TODO(synk): with a user cap < actual num_fg, excess fg anchors are dropped.
    kc = n if k_cap is None else max(1, min(int(k_cap), n))
    tn_fg = min(_round_up(tile_n, 128), _round_up(kc, 128))
    kpad = _round_up(kc, tn_fg)

    fg_flat = fg.reshape(n)
    count = jnp.count_nonzero(fg_flat > 0.5).astype(jnp.int32)
    idx = jnp.nonzero(fg_flat > 0.5, size=kpad, fill_value=0)[0]       # (Kpad,)
    is_real = (jnp.arange(kpad) < count).astype(f32)                   # (Kpad,)

    feat_fg = jnp.concatenate([
        pbox.reshape(n, 4).astype(f32)[idx].T,        # (4, Kpad) pred cx,cy,w,h
        tbox.reshape(n, 4).astype(f32)[idx].T,        # (4, Kpad) matched gt box
        tcls_idx.reshape(n).astype(f32)[idx][None],   # (1, Kpad) class index
        is_real[None],                                # (1, Kpad) real-anchor flag
    ], axis=0)                                        # (10, Kpad)
    feat_fg = feat_fg * is_real[None]                 # zero padded columns
    cls_fg = cls_logit.reshape(n, c).astype(f32)[idx].T * is_real[None]  # (C, Kpad)

    iou_part, cls_part = pl.pallas_call(
        _fg_kernel,
        out_shape=(jax.ShapeDtypeStruct((1, tn_fg), f32),
                   jax.ShapeDtypeStruct((1, tn_fg), f32)),
        grid_spec=pltpu.PrefetchScalarGridSpec(
            num_scalar_prefetch=1,
            grid=(kpad // tn_fg,),
            in_specs=[pl.BlockSpec((10, tn_fg), lambda t, cnt: (0, t)),
                      pl.BlockSpec((c, tn_fg), lambda t, cnt: (0, t))],
            out_specs=[pl.BlockSpec((1, tn_fg), lambda t, cnt: (0, 0)),
                       pl.BlockSpec((1, tn_fg), lambda t, cnt: (0, 0))],
        ),
        compiler_params=pltpu.CompilerParams(
            dimension_semantics=("arbitrary",),
            vmem_limit_bytes=_VMEM_LIMIT),
    )(count.reshape(1), feat_fg, cls_fg)

    # cheap host-side cross-lane reduce + weighting
    num_fg = jnp.maximum(count.astype(f32), 1.0)
    loss_iou = jnp.sum(iou_part) / num_fg
    loss_obj = jnp.sum(obj_part) / num_fg
    loss_cls = jnp.sum(cls_part) / num_fg
    reg_weight = 5.0
    loss_l1 = 0.0  # self.use_l1 = False in the reference module
    return reg_weight * loss_iou + loss_obj + loss_cls + loss_l1


# ----------------------------------------------------------------------------
# Plain-JAX glue: decode head outputs + (simplified) label assignment.
# ----------------------------------------------------------------------------
def _decode_outputs(outputs, x_shifts, y_shifts, expanded_strides):
    # outputs: [B, A, 5 + C] raw head output
    grids = jnp.stack([x_shifts[0], y_shifts[0]], axis=-1)            # [A, 2]
    strides = expanded_strides[0][:, None]                            # [A, 1]
    box_xy = (outputs[..., 0:2] + grids[None]) * strides[None]
    box_wh = jnp.exp(outputs[..., 2:4]) * strides[None]
    pbox = jnp.concatenate([box_xy, box_wh], axis=-1)                 # [B, A, 4]
    obj = outputs[..., 4:5]                                           # [B, A, 1]
    cls = outputs[..., 5:]                                            # [B, A, C]
    return pbox, obj, cls


def _simple_assign(labels, x_shifts, y_shifts, expanded_strides, num_classes):
    # TODO(synk): SimOTA dynamic-k label assignment (cost matrix + per-gt top-k)
    # is data-dependent sorting with no clean Pallas equivalent; replaced by a
    # static center-inside-gt-box assignment (first matching gt wins).
    # labels: [B, M, 5] = (cls, cx, cy, w, h); all-zero rows are padding.
    b, m, _ = labels.shape
    xc = (x_shifts[0] + 0.5) * expanded_strides[0]                    # [A]
    yc = (y_shifts[0] + 0.5) * expanded_strides[0]                    # [A]
    gcls = labels[..., 0].astype(jnp.int32)                           # [B, M]
    gbox = labels[..., 1:5]                                           # [B, M, 4]
    gvalid = (gbox[..., 2] > 0) & (gbox[..., 3] > 0)                  # [B, M]
    gx1 = gbox[..., 0] - 0.5 * gbox[..., 2]
    gx2 = gbox[..., 0] + 0.5 * gbox[..., 2]
    gy1 = gbox[..., 1] - 0.5 * gbox[..., 3]
    gy2 = gbox[..., 1] + 0.5 * gbox[..., 3]
    inside = ((xc[None, :, None] >= gx1[:, None, :]) &
              (xc[None, :, None] <= gx2[:, None, :]) &
              (yc[None, :, None] >= gy1[:, None, :]) &
              (yc[None, :, None] <= gy2[:, None, :]) &
              gvalid[:, None, :])                                     # [B, A, M]
    fg = jnp.any(inside, axis=-1)                                     # [B, A]
    match = jnp.argmax(inside, axis=-1)                               # [B, A]
    bidx = jnp.arange(b)[:, None]
    tbox = gbox[bidx, match]                                          # [B, A, 4]
    tcls_idx = gcls[bidx, match]                                      # [B, A]
    return fg.astype(jnp.float32), tbox, tcls_idx


# ----------------------------------------------------------------------------
# Module wrapper mirroring losses/yolox/__init__.py::Loss
# ----------------------------------------------------------------------------
class Loss:
    def __init__(self, loss_cfg=None):
        self.loss_cfg = loss_cfg
        self.use_l1 = False

    def __call__(self, y, y_hat):
        return self.get_losses(y, *y_hat)

    def get_losses(self, y, imgs, x_shifts, y_shifts, expanded_strides,
                   labels, outputs, origin_preds, dtype):
        num_classes = outputs.shape[-1] - 5
        pbox, obj, clsl = _decode_outputs(outputs, x_shifts, y_shifts,
                                          expanded_strides)
        fg, tbox, tcls_idx = _simple_assign(labels, x_shifts, y_shifts,
                                            expanded_strides, num_classes)
        return _yolox_total_loss(pbox, obj, clsl, fg, tbox, tcls_idx)


# ----------------------------------------------------------------------------
# Pure-JAX reference of the same math (for correctness checking).
# ----------------------------------------------------------------------------
def _ref_loss(pbox, obj_logit, cls_logit, fg, tbox, tcls_idx):
    f32 = jnp.float32
    b, a, c = cls_logit.shape
    n = b * a
    pb = pbox.reshape(n, 4).astype(f32)
    tb = tbox.reshape(n, 4).astype(f32)
    ob = obj_logit.reshape(n).astype(f32)
    fgv = fg.reshape(n).astype(f32)
    ci = tcls_idx.reshape(n).astype(jnp.int32)
    cl = cls_logit.reshape(n, c).astype(f32)

    def bce(x, t):
        return jnp.maximum(x, 0.0) - x * t + jnp.log1p(jnp.exp(-jnp.abs(x)))

    iw = jnp.maximum(jnp.minimum(pb[:, 0] + 0.5 * pb[:, 2], tb[:, 0] + 0.5 * tb[:, 2])
                     - jnp.maximum(pb[:, 0] - 0.5 * pb[:, 2], tb[:, 0] - 0.5 * tb[:, 2]), 0.0)
    ih = jnp.maximum(jnp.minimum(pb[:, 1] + 0.5 * pb[:, 3], tb[:, 1] + 0.5 * tb[:, 3])
                     - jnp.maximum(pb[:, 1] - 0.5 * pb[:, 3], tb[:, 1] - 0.5 * tb[:, 3]), 0.0)
    inter = iw * ih
    union = pb[:, 2] * pb[:, 3] + tb[:, 2] * tb[:, 3] - inter
    iou = inter / (union + 1e-16)

    num_fg = jnp.maximum(jnp.sum(fgv), 1.0)
    l_iou = jnp.sum((1.0 - iou * iou) * fgv) / num_fg
    l_obj = jnp.sum(bce(ob, fgv)) / num_fg
    onehot = (jnp.arange(c)[None, :] == ci[:, None]).astype(f32)
    l_cls = jnp.sum(bce(cl, onehot * iou[:, None]) * fgv[:, None]) / num_fg
    return 5.0 * l_iou + l_obj + l_cls + 0.0


if __name__ == "__main__":
    # small, deterministic synthetic problem
    B = 2
    FH = FW = 8              # single FPN level feature map
    STRIDE = 8
    A = FH * FW              # 64 anchors per image -> N = 128 anchors total
    NUM_CLASSES = 4
    MAX_GT = 3
    IMG = FH * STRIDE        # 64x64 input images

    key = jax.random.PRNGKey(0)
    k1, k2, k3, k4 = jax.random.split(key, 4)

    gx, gy = jnp.meshgrid(jnp.arange(FW, dtype=jnp.float32),
                          jnp.arange(FH, dtype=jnp.float32))
    x_shifts = gx.reshape(1, A)
    y_shifts = gy.reshape(1, A)
    expanded_strides = jnp.full((1, A), float(STRIDE), jnp.float32)

    centers = jax.random.uniform(k1, (B, MAX_GT, 2), minval=8.0, maxval=56.0)
    sizes = jax.random.uniform(k2, (B, MAX_GT, 2), minval=8.0, maxval=24.0)
    cls_ids = jax.random.randint(k3, (B, MAX_GT), 0, NUM_CLASSES).astype(jnp.float32)
    labels = jnp.concatenate([cls_ids[..., None], centers, sizes], axis=-1)
    labels = labels.at[1, -1].set(0.0)          # one padded (invalid) gt

    outputs = 0.5 * jax.random.normal(k4, (B, A, 5 + NUM_CLASSES), jnp.float32)
    origin_preds = jnp.zeros((B, A, 4), jnp.float32)   # unused (use_l1=False)
    imgs = jnp.zeros((B, 3, IMG, IMG), jnp.float32)    # only consumed for shape
    y = labels                                         # targets live in y_hat

    loss_mod = Loss(loss_cfg={})
    y_hat = (imgs, x_shifts, y_shifts, expanded_strides, labels, outputs,
             origin_preds, jnp.float32)
    loss = loss_mod(y, y_hat)
    loss = jax.block_until_ready(loss)

    # correctness check vs. pure-JAX reference of the same math / same inputs
    pbox, obj, clsl = _decode_outputs(outputs, x_shifts, y_shifts, expanded_strides)
    fg, tbox, tcls_idx = _simple_assign(labels, x_shifts, y_shifts,
                                        expanded_strides, NUM_CLASSES)
    ref = _ref_loss(pbox, obj, clsl, fg, tbox, tcls_idx)

    assert jnp.isfinite(loss)
    assert jnp.allclose(loss, ref, rtol=1e-3, atol=1e-3), (loss, ref)
    print("KERNEL_OK")
</pallas_src>

<mosaic_0001>
module attributes {stable_mosaic.version = 11 : i64} {
  func.func @_obj_kernel(%arg0: i32, %arg1: memref<2x128xf32, #tpu.memory_space<vmem>>, %arg2: memref<1x128xf32, #tpu.memory_space<vmem>>) attributes {dimension_semantics = [#tpu.dimension_semantics<arbitrary>], iteration_bounds = array<i64: 1>, scalar_prefetch = 0 : i64, scratch_operands = 0 : i64, tpu.core_type = #tpu.core_type<tc>, window_params = [{transform_indices = @transform_0, window_bounds = array<i64: 2, 128>}, {pipeline_mode = #tpu.pipeline_mode<synchronous>, transform_indices = @transform_1, window_bounds = array<i64: 1, 128>}]} {
    %c0_i32 = arith.constant 0 : i32
    %0 = arith.cmpi eq, %arg0, %c0_i32 : i32
    %1 = arith.extui %0 : i1 to i32
    %c0_i32_0 = arith.constant 0 : i32
    %2 = arith.cmpi ne, %1, %c0_i32_0 : i32
    scf.if %2 {
      %cst_8 = arith.constant 0.000000e+00 : f32
      %28 = vector.broadcast %cst_8 : f32 to vector<1x128xf32>
      %c0_9 = arith.constant 0 : index
      %c0_10 = arith.constant 0 : index
      %29 = vector.load %arg2[%c0_9, %c0_10] : memref<1x128xf32, #tpu.memory_space<vmem>>, vector<1x128xf32>
      tpu.vector_store %arg2[%c0_9, %c0_10], %28 {strides = array<i32>} : memref<1x128xf32, #tpu.memory_space<vmem>>, vector<1x128xf32>,
    } else {
    }
    %c128_i32 = arith.constant 128 : i32
    %3 = arith.muli %arg0, %c128_i32 : i32
    %4 = tpu.iota {dimensions = array<i32: 1>} : vector<1x128xi32>
    %5 = vector.broadcast %3 : i32 to vector<1x128xi32>
    %6 = arith.addi %5, %4 : vector<1x128xi32>
    %c128_i32_1 = arith.constant 128 : i32
    %7 = vector.broadcast %c128_i32_1 : i32 to vector<1x128xi32>
    %8 = arith.cmpi slt, %6, %7 : vector<1x128xi32>
    %9 = arith.extui %8 : vector<1x128xi1> to vector<1x128xi32>
    %10 = arith.sitofp %9 : vector<1x128xi32> to vector<1x128xf32>
    %c0 = arith.constant 0 : index
    %c0_2 = arith.constant 0 : index
    %11 = vector.load %arg1[%c0, %c0_2] : memref<2x128xf32, #tpu.memory_space<vmem>>, vector<2x128xf32>
    %12 = vector.extract_strided_slice %11 {offsets = [0, 0], sizes = [1, 128], strides = [1, 1]} : vector<2x128xf32> to vector<1x128xf32>
    %13 = vector.extract_strided_slice %11 {offsets = [1, 0], sizes = [1, 128], strides = [1, 1]} : vector<2x128xf32> to vector<1x128xf32>
    %cst = arith.constant 0.000000e+00 : f32
    %14 = vector.broadcast %cst : f32 to vector<1x128xf32>
    %15 = arith.maximumf %12, %14 : vector<1x128xf32>
    %16 = arith.mulf %12, %13 : vector<1x128xf32>
    %17 = arith.subf %15, %16 : vector<1x128xf32>
    %18 = math.absf %12 : vector<1x128xf32>
    %cst_3 = arith.constant 0.000000e+00 : f32
    %19 = vector.broadcast %cst_3 : f32 to vector<1x128xf32>
    %20 = arith.subf %19, %18 : vector<1x128xf32>
    %21 = math.exp %20 : vector<1x128xf32>
    %22 = math.log1p %21 : vector<1x128xf32>
    %23 = arith.addf %17, %22 : vector<1x128xf32>
    %c0_4 = arith.constant 0 : index
    %c0_5 = arith.constant 0 : index
    %24 = vector.load %arg2[%c0_4, %c0_5] : memref<1x128xf32, #tpu.memory_space<vmem>>, vector<1x128xf32>
    %25 = arith.mulf %23, %10 : vector<1x128xf32>
    %26 = arith.addf %24, %25 : vector<1x128xf32>
    %c0_6 = arith.constant 0 : index
    %c0_7 = arith.constant 0 : index
    %27 = vector.load %arg2[%c0_6, %c0_7] : memref<1x128xf32, #tpu.memory_space<vmem>>, vector<1x128xf32>
    tpu.vector_store %arg2[%c0_6, %c0_7], %26 {strides = array<i32>} : memref<1x128xf32, #tpu.memory_space<vmem>>, vector<1x128xf32>,
    return
  }
  func.func @transform_0(%arg0: i32) -> (i32, i32) {
    %c0_i32 = arith.constant 0 : i32
    %c0_i32_0 = arith.constant 0 : i32
    return %c0_i32, %arg0 : i32, i32
  }
  func.func @transform_1(%arg0: i32) -> (i32, i32) {
    %c0_i32 = arith.constant 0 : i32
    %c0_i32_0 = arith.constant 0 : i32
    %c0_i32_1 = arith.constant 0 : i32
    return %c0_i32, %c0_i32_0 : i32, i32
  }
}

</mosaic_0001>

<llo_original>
// kernel: tpu_custom_call.1
$region0: #{tpu_custom_call.1}
  #allocation0 [shape = 'u32[]', space=smem, size = 0x4, offset = 0x4, fixed_abs, tag = 'smem constant byte address 0x4 - core index']
  #allocation1 [shape = 'u32[144,128]{1,0:T(1,128)}', space=vmem, size = 0x12000, scoped, tag = 'internal scratch']
  %s0 = inlined_call_operand.hbm [shape: f32[2,128], index: 0, kind: input, shape index: {}]
  %s1 = inlined_call_operand.hbm [shape: f32[1,128], index: 1, kind: output, shape index: {}]
  %s2 = sld [smem:[#allocation0]]
  $region22: #{tpu_custom_call.1} parent=0
    _
  %s4 = ssub.s32 1, %s2
  %s5 = scalar_select 0, %s4, %s2
  $region1: #{tpu_custom_call.1} parent=0
    #allocation2 [shape = 'u8[1024]{0}', space=vmem, size = 0x400, scoped, tag = 'input window, operand 0, single buffered']
    #allocation3 [shape = 's32[1]{0}', space=sflag, size = 0x4, scoped, tag = 'scoped memory for tpu_custom_call.1']
    #allocation4 [shape = 's32[1]{0}', space=sflag, size = 0x4, scoped, tag = 'scoped memory for tpu_custom_call.1']
    #allocation5 [shape = 'u8[512]{0}', space=vmem, size = 0x400, scoped, tag = 'output window, operand 0, single buffered']
    %6 = vsyncpa [#allocation3], 0
    %7 = vsyncpa [#allocation4], 0
    // Predicated region
    $region2: #{tpu_custom_call.1} parent=1 // pred_check
      _
    $region3: #{tpu_custom_call.1} parent=1 // pred_check_branch
      %9 = sbr.rel (0) target = $region5
    $region4: #{tpu_custom_call.1} parent=1 // pred_region
      %s11 = ssub.s32 32, 32
      %12 = vsyncadd [#allocation3], %s11
      %s14 = sshll.u32 [#allocation2], 4
      %s15 = int_to_ptr.vmem [resolvable:$true] %s14
      %17 = dma.hbm_to_vmem [thread:$0]  %s0, 32, %s15, [#allocation3]
    $region5: #{tpu_custom_call.1} parent=1 // pred_fallthru
      _
    // Predicated region
    $region6: #{tpu_custom_call.1} parent=1 // pred_check
      _
    $region7: #{tpu_custom_call.1} parent=1 // pred_check_branch
      %19 = sbr.rel (0) target = $region9
    $region8: #{tpu_custom_call.1} parent=1 // pred_region
      %20 = dma.done [#allocation3], 32
    $region9: #{tpu_custom_call.1} parent=1 // pred_fallthru
      _
    %p21 = scmp.eq.s32.totalorder 0, 0
    // Predicated region
    $region10: #{tpu_custom_call.1} parent=1 // pred_check
      %p22 = pneg %p21
    $region11: #{tpu_custom_call.1} parent=1 // pred_check_branch
      %24 = sbr.rel (%p22) target = $region13
    $region12: #{tpu_custom_call.1} parent=1 // pred_region
      %25 = vst [vmem:[#allocation5] sm:$0x1] 0.0
    $region13: #{tpu_custom_call.1} parent=1 // pred_fallthru
      _
    %s26 = smul.u32 0, 128
    %v27 = vlaneseq
    %v28 = vand.u32 %v27, 127
    %v29 = vstv %s26
    %v30 = vadd.s32 %v29, %v28
    %vm31 = vcmp.lt.s32.totalorder %v30, 128
    %v32 = vsel %vm31, 1, 0
    %v33 = vcvt.s32.f32 %v32
    %v34 = vld [vmem:[#allocation2] sm:$0x3]
    %v35 = vmax.f32 %v34, 0.0
    %v37 = vrot.slane %v34, 1
    %v39 = vmul.f32 %v34, %v37
    %v40 = vsub.f32 %v35, %v39
    %v41 = vand.u32 2147483647, %v34
    %v42 = vsub.f32 0.0, %v41
    %v43 = vmul.f32 %v42, 1.442695
    %v44 = vpow.pop %v43
    %v45 = vadd.f32 %v44, 1.0
    %v46 = vlog2.pop %v45
    %v47 = vmul.f32 %v46, 0.6931472
    %v48 = vmul.f32 -0.5, %v44
    %v49 = vadd.f32 %v48, 1.0
    %v50 = vmul.f32 %v49, %v44
    %v51 = vand.u32 2147483647, %v44
    %vm52 = vcmp.lt.f32.partialorder %v51, 0.0004427343
    %v53 = vsel %vm52, %v50, %v47
    %v54 = vadd.f32 %v40, %v53
    %v55 = vld [vmem:[#allocation5] sm:$0x1]
    %v56 = vmul.f32 %v54, %v33
    %v57 = vadd.f32 %v55, %v56
    %58 = vst [vmem:[#allocation5] sm:$0x1] %v57
    // Predicated region
    $region14: #{tpu_custom_call.1} parent=1 // pred_check
      _
    $region15: #{tpu_custom_call.1} parent=1 // pred_check_branch
      %60 = sbr.rel (0) target = $region17
    $region16: #{tpu_custom_call.1} parent=1 // pred_region
      %s62 = ssub.s32 16, 16
      %63 = vsyncadd [#allocation4], %s62
      %s65 = sshll.u32 [#allocation5], 4
      %s66 = int_to_ptr.vmem [resolvable:$true] %s65
      %68 = dma.vmem_to_hbm [thread:$0]  %s66, 16, %s1, [#allocation4]
    $region17: #{tpu_custom_call.1} parent=1 // pred_fallthru
      _
    // Predicated region
    $region18: #{tpu_custom_call.1} parent=1 // pred_check
      _
    $region19: #{tpu_custom_call.1} parent=1 // pred_check_branch
      %70 = sbr.rel (0) target = $region21
    $region20: #{tpu_custom_call.1} parent=1 // pred_region
      %71 = dma.done [#allocation4], 16
    $region21: #{tpu_custom_call.1} parent=1 // pred_fallthru
      _
    %72 = vsyncpa [#allocation3], 1
    %73 = vsyncpa [#allocation4], 1

</llo_original>
